<compile_context>
chip_gen: v6e
topology: v6e:2x2x1
jax: 0.10.0
libtpu: 0.0.40
codegen_flags: <defaults>
</compile_context>

<pallas_src>
import jax
import jax.numpy as jnp
from jax.experimental import pallas as pl
from jax.experimental.pallas import tpu as pltpu


# ---------------------------------------------------------------------------
# tile-size helpers
# ---------------------------------------------------------------------------
def _pick_row_tile(n_rows, preferred):
    """Largest row tile <= preferred that divides n_rows and is a multiple of 8."""
    if n_rows <= preferred:
        return n_rows
    for tm in range(min(preferred, n_rows), 7, -1):
        if n_rows % tm == 0 and tm % 8 == 0:
            return tm
    return n_rows  # fall back to a single untiled row block


def _pick_col_tile(n_cols, preferred):
    """Largest lane-dense (multiple-of-128) column tile that divides n_cols."""
    if n_cols <= preferred or n_cols % 128 != 0:
        return n_cols
    tn = max((preferred // 128) * 128, 128)
    while n_cols % tn != 0:
        tn -= 128
    return tn


def _pick_batch_tile(n_batch, preferred):
    bb = max(1, min(preferred, n_batch))
    while n_batch % bb != 0:
        bb -= 1
    return bb


# ---------------------------------------------------------------------------
# tiled linear (used for the QKV projection and the output projection)
# ---------------------------------------------------------------------------
def _linear_kernel(x_ref, w_ref, o_ref):
    o_ref[...] = jnp.dot(
        x_ref[...], w_ref[...], preferred_element_type=jnp.float32
    ).astype(o_ref.dtype)


def _linear_bias_kernel(x_ref, w_ref, b_ref, o_ref):
    acc = jnp.dot(x_ref[...], w_ref[...], preferred_element_type=jnp.float32)
    acc = acc + b_ref[...].astype(jnp.float32)
    o_ref[...] = acc.astype(o_ref.dtype)


def linear(x2, w, b=None, *, tm_pref=256, tn_pref=512):
    """Tiled (N, K) @ (K, M) [+ b] -> (N, M)."""
    N, K = x2.shape
    Kw, M = w.shape
    assert K == Kw
    tm = _pick_row_tile(N, tm_pref)
    tn = _pick_col_tile(M, tn_pref)
    grid = (N // tm, M // tn)

    in_specs = [
        pl.BlockSpec((tm, K), lambda i, j: (i, 0)),   # activation rows
        pl.BlockSpec((K, tn), lambda i, j: (0, j)),   # weight columns
    ]
    args = [x2, w]
    kernel = _linear_kernel
    if b is not None:
        in_specs.append(pl.BlockSpec((1, tn), lambda i, j: (0, j)))
        args.append(b.reshape(1, M))
        kernel = _linear_bias_kernel

    return pl.pallas_call(
        kernel,
        out_shape=jax.ShapeDtypeStruct((N, M), x2.dtype),
        grid_spec=pltpu.PrefetchScalarGridSpec(
            num_scalar_prefetch=0,
            grid=grid,
            in_specs=in_specs,
            out_specs=pl.BlockSpec((tm, tn), lambda i, j: (i, j)),
        ),
        compiler_params=pltpu.CompilerParams(
            dimension_semantics=("parallel", "parallel"),
            vmem_limit_bytes=32 * 1024 * 1024,
        ),
    )(*args)


# ---------------------------------------------------------------------------
# batched softmax attention: softmax(q k^T / sqrt(d)) v over (G, L, d) problems
# ---------------------------------------------------------------------------
def _attention_kernel(q_ref, k_ref, v_ref, o_ref):
    q = q_ref[...]
    k = k_ref[...]
    v = v_ref[...]
    scale = float(v.shape[-1]) ** (-0.5)
    # Scores on the MXU, accumulated in f32; softmax in f32 on VPU/EUP.
    s = jnp.einsum("bqd,bkd->bqk", q, k, preferred_element_type=jnp.float32)
    s = s * scale
    s = s - jnp.max(s, axis=-1, keepdims=True)
    p = jnp.exp(s)
    denom = jnp.sum(p, axis=-1, keepdims=True)
    p = p * pl.reciprocal(denom, approx=True)   # EUP slot, nearly free
    o = jnp.einsum(
        "bqk,bkd->bqd", p.astype(v.dtype), v, preferred_element_type=jnp.float32
    )
    o_ref[...] = o.astype(o_ref.dtype)


def batched_attention(q, k, v, *, vmem_budget_bytes=12 * 1024 * 1024):
    """q, k, v: (G, L, d) -> (G, L, d); attention computed per batch element."""
    G, L, d = q.shape
    itemsize = jnp.dtype(q.dtype).itemsize
    # Double-buffered q/k/v/o blocks + f32 score/prob temporaries + f32 acc.
    per_problem = (
        2 * 4 * L * d * itemsize   # pipelined input/output tiles (2 buffers each)
        + 2 * L * L * 4            # scores + probabilities in f32
        + 2 * L * d * 4            # f32 PV accumulator / cast temporaries
    )
    bb = _pick_batch_tile(G, max(1, vmem_budget_bytes // per_problem))
    grid = (G // bb,)
    spec = pl.BlockSpec((bb, L, d), lambda i: (i, 0, 0))
    return pl.pallas_call(
        _attention_kernel,
        out_shape=jax.ShapeDtypeStruct((G, L, d), q.dtype),
        grid_spec=pltpu.PrefetchScalarGridSpec(
            num_scalar_prefetch=0,
            grid=grid,
            in_specs=[spec, spec, spec],
            out_specs=spec,
        ),
        compiler_params=pltpu.CompilerParams(
            dimension_semantics=("parallel",),
            vmem_limit_bytes=32 * 1024 * 1024,
        ),
    )(q, k, v)


# ---------------------------------------------------------------------------
# FDotAttention forward
# ---------------------------------------------------------------------------
def fdot_attention(x, w_qkv, w_out, b_out, *, heads=8):
    """x: (b, t, n, c) -> (b, t, n, c). w_qkv: (c, 3c), w_out: (c, c), b_out: (c,)."""
    b, t, n, c = x.shape
    h = heads
    assert c % h == 0 and h % 2 == 0
    d = c // h
    hh = h // 2
    N = b * t * n

    # --- 1) QKV projection (bias=False) ------------------------------------
    qkv = linear(x.reshape(N, c), w_qkv)                    # (N, 3c)
    # Row-major split of the 3c axis matches PyTorch reshape(b, t*n, 3, h, d).
    qkv6 = qkv.reshape(b, t, n, 3, h, d)

    # --- 2a) spatial attention: heads [0, h/2) attend over n, per (b, t) ----
    def spatial(part):                                       # part 0/1/2 = q/k/v
        s = qkv6[:, :, :, part, :hh, :]                      # (b, t, n, hh, d)
        s = jnp.transpose(s, (0, 1, 3, 2, 4))                # (b, t, hh, n, d)
        return s.reshape(b * t * hh, n, d)

    s_out = batched_attention(spatial(0), spatial(1), spatial(2))
    s_out = jnp.transpose(
        s_out.reshape(b, t, hh, n, d), (0, 1, 3, 2, 4))      # (b, t, n, hh, d)

    # --- 2b) temporal attention: heads [h/2, h) attend over t, per (b, n) ---
    def temporal(part):
        s = qkv6[:, :, :, part, hh:, :]                      # (b, t, n, hh, d)
        s = jnp.transpose(s, (0, 2, 3, 1, 4))                # (b, n, hh, t, d)
        return s.reshape(b * n * hh, t, d)

    t_out = batched_attention(temporal(0), temporal(1), temporal(2))
    t_out = jnp.transpose(
        t_out.reshape(b, n, hh, t, d), (0, 3, 1, 2, 4))      # (b, t, n, hh, d)

    # --- 3) concat heads (spatial, then temporal) + output projection -------
    out = jnp.concatenate([s_out, t_out], axis=3).reshape(N, c)
    # TODO(synk): nn.Dropout after the projection is an inference no-op and is omitted.
    out = linear(out, w_out, b_out)
    return out.reshape(b, t, n, c)


# ---------------------------------------------------------------------------
# pure-JAX reference mirroring the PyTorch forward exactly
# ---------------------------------------------------------------------------
def fdot_attention_reference(x, w_qkv, w_out, b_out, *, heads=8):
    b, t, n, c = x.shape
    h = heads
    d = c // h
    hh = h // 2
    xf = x.astype(jnp.float32)

    def agg(q, k, v):
        scale = v.shape[-1] ** (-0.5)
        attn = jnp.einsum("...qd,...kd->...qk", q, k) * scale
        attn = jax.nn.softmax(attn, axis=-1)
        return jnp.einsum("...qk,...kd->...qd", attn, v)

    qkv = xf @ w_qkv.astype(jnp.float32)                     # (b, t, n, 3c)
    qkv = jnp.swapaxes(qkv.reshape(b, t * n, 3, h, d), 1, 3)
    q, k, v = qkv[:, :, 0], qkv[:, :, 1], qkv[:, :, 2]
    qs, qt = q[:, :hh], q[:, hh:]
    ks, kt = k[:, :hh], k[:, hh:]
    vs, vt = v[:, :hh], v[:, hh:]

    sp = lambda s: jnp.transpose(
        s.reshape(b, hh, t, n, d), (0, 2, 1, 3, 4)).reshape(b * t, hh, n, d)
    s_out = agg(sp(qs), sp(ks), sp(vs))
    s_out = jnp.transpose(s_out.reshape(b, t, hh, n, d), (0, 2, 1, 3, 4))

    tp = lambda s: jnp.transpose(
        s.reshape(b, hh, t, n, d), (0, 3, 1, 2, 4)).reshape(b * n, hh, t, d)
    t_out = agg(tp(qt), tp(kt), tp(vt))
    t_out = jnp.transpose(t_out.reshape(b, n, hh, t, d), (0, 2, 3, 1, 4))

    out = jnp.concatenate([s_out, t_out], axis=1)
    out = jnp.transpose(out, (0, 2, 3, 1, 4)).reshape(b, t, n, c)
    out = out @ w_out.astype(jnp.float32) + b_out.astype(jnp.float32)
    return out.astype(x.dtype)


if __name__ == "__main__":
    b, t, n, c, heads = 2, 4, 16, 32, 8   # (batch, frames, spatial tokens, dim)

    key = jax.random.PRNGKey(0)
    kx, kq, kw, kb = jax.random.split(key, 4)
    x = jax.random.normal(kx, (b, t, n, c), dtype=jnp.float32)
    w_qkv = jax.random.normal(kq, (c, 3 * c), dtype=jnp.float32) * 0.05   # to_qkv.weight.T
    w_out = jax.random.normal(kw, (c, c), dtype=jnp.float32) * 0.05       # to_out[0].weight.T
    b_out = jax.random.normal(kb, (c,), dtype=jnp.float32) * 0.05         # to_out[0].bias

    out = fdot_attention(x, w_qkv, w_out, b_out, heads=heads)
    out = jax.block_until_ready(out)

    ref = fdot_attention_reference(x, w_qkv, w_out, b_out, heads=heads)
    assert out.shape == (b, t, n, c)
    assert jnp.allclose(out, ref, atol=5e-3, rtol=5e-3), (
        "mismatch vs reference: max abs diff "
        f"{float(jnp.max(jnp.abs(out - ref)))}"
    )
    print("KERNEL_OK")
</pallas_src>

<mosaic_0001>
module attributes {stable_mosaic.version = 11 : i64} {
  func.func @_linear_kernel(%arg0: i32, %arg1: i32, %arg2: memref<128x32xf32, #tpu.memory_space<vmem>>, %arg3: memref<32x96xf32, #tpu.memory_space<vmem>>, %arg4: memref<128x96xf32, #tpu.memory_space<vmem>>) attributes {dimension_semantics = [#tpu.dimension_semantics<parallel>, #tpu.dimension_semantics<parallel>], iteration_bounds = array<i64: 1, 1>, scalar_prefetch = 0 : i64, scratch_operands = 0 : i64, tpu.core_type = #tpu.core_type<tc>, window_params = [{transform_indices = @transform_0, window_bounds = array<i64: 128, 32>}, {transform_indices = @transform_1, window_bounds = array<i64: 32, 96>}, {transform_indices = @transform_2, window_bounds = array<i64: 128, 96>}]} {
    %c0 = arith.constant 0 : index
    %c0_0 = arith.constant 0 : index
    %0 = vector.load %arg2[%c0, %c0_0] : memref<128x32xf32, #tpu.memory_space<vmem>>, vector<128x32xf32>
    %c0_1 = arith.constant 0 : index
    %c0_2 = arith.constant 0 : index
    %1 = vector.load %arg3[%c0_1, %c0_2] : memref<32x96xf32, #tpu.memory_space<vmem>>, vector<32x96xf32>
    %cst = arith.constant dense<0.000000e+00> : vector<128x96xf32>
    %2 = tpu.matmul %0, %1, %cst {dimension_numbers = #tpu.dot_dimension_numbers<[1], [0], [0], [1], [0, 0, 1, 1], [], []>} : vector<128x32xf32>, vector<32x96xf32>, vector<128x96xf32> -> vector<128x96xf32>
    %c0_3 = arith.constant 0 : index
    %c0_4 = arith.constant 0 : index
    %3 = vector.load %arg4[%c0_3, %c0_4] : memref<128x96xf32, #tpu.memory_space<vmem>>, vector<128x96xf32>
    tpu.vector_store %arg4[%c0_3, %c0_4], %2 {strides = array<i32>} : memref<128x96xf32, #tpu.memory_space<vmem>>, vector<128x96xf32>,
    return
  }
  func.func @transform_0(%arg0: i32, %arg1: i32) -> (i32, i32) {
    %c0_i32 = arith.constant 0 : i32
    %c0_i32_0 = arith.constant 0 : i32
    return %arg0, %c0_i32 : i32, i32
  }
  func.func @transform_1(%arg0: i32, %arg1: i32) -> (i32, i32) {
    %c0_i32 = arith.constant 0 : i32
    %c0_i32_0 = arith.constant 0 : i32
    return %c0_i32, %arg1 : i32, i32
  }
  func.func @transform_2(%arg0: i32, %arg1: i32) -> (i32, i32) {
    %c0_i32 = arith.constant 0 : i32
    return %arg0, %arg1 : i32, i32
  }
}

</mosaic_0001>

<llo_original>
// kernel: tpu_custom_call.1
$region0: #{tpu_custom_call.1}
  #allocation0 [shape = 'u32[]', space=smem, size = 0x4, offset = 0x4, fixed_abs, tag = 'smem constant byte address 0x4 - core index']
  #allocation1 [shape = 'u32[144,128]{1,0:T(1,128)}', space=vmem, size = 0x12000, scoped, tag = 'internal scratch']
  %s0 = inlined_call_operand.vmem [shape: f32[128,32], index: 0, kind: input, shape index: {}]
  %s1 = inlined_call_operand.vmem [shape: f32[32,96], index: 1, kind: input, shape index: {}]
  %s2 = inlined_call_operand.vmem [shape: f32[128,96], index: 2, kind: output, shape index: {}]
  %s3 = sld [smem:[#allocation0]]
  $region18: #{tpu_custom_call.1} parent=0
    _
  %s5 = ssub.s32 1, %s3
  %s6 = scalar_select 0, %s5, %s3
  // Predicated region
  $region2: #{tpu_custom_call.1} parent=0 // pred_check
    _
  $region3: #{tpu_custom_call.1} parent=0 // pred_check_branch
    %8 = sbr.rel (0) target = $region5
  $region4: #{tpu_custom_call.1} parent=0 // pred_region
    _
  $region5: #{tpu_custom_call.1} parent=0 // pred_fallthru
    _
  // Predicated region
  $region6: #{tpu_custom_call.1} parent=0 // pred_check
    _
  $region7: #{tpu_custom_call.1} parent=0 // pred_check_branch
    %10 = sbr.rel (0) target = $region9
  $region8: #{tpu_custom_call.1} parent=0 // pred_region
    _
  $region9: #{tpu_custom_call.1} parent=0 // pred_fallthru
    _
  %v11 = vld [vmem:[%s0] sm:$0xff]
  %v12 = vld [vmem:[%s0 + $0x8] sm:$0xff]
  %v13 = vld [vmem:[%s0 + $0x10] sm:$0xff]
  %v14 = vld [vmem:[%s0 + $0x18] sm:$0xff]
  %v15 = vld [vmem:[%s0 + $0x20] sm:$0xff]
  %v16 = vld [vmem:[%s0 + $0x28] sm:$0xff]
  %v17 = vld [vmem:[%s0 + $0x30] sm:$0xff]
  %v18 = vld [vmem:[%s0 + $0x38] sm:$0xff]
  %v19 = vld [vmem:[%s0 + $0x40] sm:$0xff]
  %v20 = vld [vmem:[%s0 + $0x48] sm:$0xff]
  %v21 = vld [vmem:[%s0 + $0x50] sm:$0xff]
  %v22 = vld [vmem:[%s0 + $0x58] sm:$0xff]
  %v23 = vld [vmem:[%s0 + $0x60] sm:$0xff]
  %v24 = vld [vmem:[%s0 + $0x68] sm:$0xff]
  %v25 = vld [vmem:[%s0 + $0x70] sm:$0xff]
  %v26 = vld [vmem:[%s0 + $0x78] sm:$0xff]
  %v27 = vld [vmem:[%s1] sm:$0xff]
  %v28 = vld [vmem:[%s1 + $0x8] sm:$0xff]
  %v29 = vld [vmem:[%s1 + $0x10] sm:$0xff]
  %v30 = vld [vmem:[%s1 + $0x18] sm:$0xff]
  %vm31 = vcmask 261120
  %v33 = vsel %vm31, %v11, 0
  %v36 = vsel %vm31, %v12, 0
  %v39 = vsel %vm31, %v13, 0
  %v42 = vsel %vm31, %v14, 0
  %v45 = vsel %vm31, %v15, 0
  %v48 = vsel %vm31, %v16, 0
  %v51 = vsel %vm31, %v17, 0
  %v54 = vsel %vm31, %v18, 0
  %v57 = vsel %vm31, %v19, 0
  %v60 = vsel %vm31, %v20, 0
  %v63 = vsel %vm31, %v21, 0
  %v66 = vsel %vm31, %v22, 0
  %v69 = vsel %vm31, %v23, 0
  %v72 = vsel %vm31, %v24, 0
  %v75 = vsel %vm31, %v25, 0
  %v78 = vsel %vm31, %v26, 0
  %80 = vmatprep.subr.mxu0 0.0
  %81 = vmatpush1.msra.mxu0 0.0
  %82 = vmatprep.subr.mxu0 0.0
  %83 = vmatpush1.msra.mxu0 0.0
  %84 = vmatprep.subr.mxu0 0.0
  %85 = vmatpush1.msra.mxu0 0.0
  %86 = vmatprep.subr.mxu0 0.0
  %87 = vmatpush1.msra.mxu0 0.0
  %88 = vmatprep.subr.mxu0 0.0
  %89 = vmatpush1.msra.mxu0 0.0
  %90 = vmatprep.subr.mxu0 0.0
  %91 = vmatpush1.msra.mxu0 0.0
  %92 = vmatprep.subr.mxu0 0.0
  %93 = vmatpush1.msra.mxu0 0.0
  %94 = vmatprep.subr.mxu0 0.0
  %95 = vmatpush1.msra.mxu0 0.0
  %96 = vmatprep.subr.mxu0 0.0
  %97 = vmatpush1.msra.mxu0 0.0
  %98 = vmatprep.subr.mxu0 0.0
  %99 = vmatpush1.msra.mxu0 0.0
  %100 = vmatprep.subr.mxu0 0.0
  %101 = vmatpush1.msra.mxu0 0.0
  %102 = vmatprep.subr.mxu0 0.0
  %103 = vmatpush1.msra.mxu0 0.0
  %104 = vmatprep.subr.mxu0 0.0
  %105 = vmatpush1.msra.mxu0 %v30
  %106 = vmatprep.subr.mxu0 0.0
  %107 = vmatpush1.msra.mxu0 %v29
  %108 = vmatprep.subr.mxu0 0.0
  %109 = vmatpush1.msra.mxu0 %v28
  %110 = vmatprep.subr.mxu0 0.0
  %111 = vmatpush1.msra.mxu0 %v27
  %112 = vmatprep.subr.mxu0 0.0
  %113 = vmatpush2.msra.mxu0 0.0
  %114 = vmatprep.subr.mxu0 0.0
  %115 = vmatpush2.msra.mxu0 0.0
  %116 = vmatprep.subr.mxu0 0.0
  %117 = vmatpush2.msra.mxu0 0.0
  %118 = vmatprep.subr.mxu0 0.0
  %119 = vmatpush2.msra.mxu0 0.0
  %120 = vmatprep.subr.mxu0 0.0
  %121 = vmatpush2.msra.mxu0 0.0
  %122 = vmatprep.subr.mxu0 0.0
  %123 = vmatpush2.msra.mxu0 0.0
  %124 = vmatprep.subr.mxu0 0.0
  %125 = vmatpush2.msra.mxu0 0.0
  %126 = vmatprep.subr.mxu0 0.0
  %127 = vmatpush2.msra.mxu0 0.0
  %128 = vmatprep.subr.mxu0 0.0
  %129 = vmatpush2.msra.mxu0 0.0
  %130 = vmatprep.subr.mxu0 0.0
  %131 = vmatpush2.msra.mxu0 0.0
  %132 = vmatprep.subr.mxu0 0.0
  %133 = vmatpush2.msra.mxu0 0.0
  %134 = vmatprep.subr.mxu0 0.0
  %135 = vmatpush2.msra.mxu0 0.0
  %136 = vmatprep.subr.mxu0 0.0
  %137 = vmatpush2.msra.mxu0 0.0
  %138 = vmatprep.subr.mxu0 0.0
  %139 = vmatpush2.msra.mxu0 0.0
  %140 = vmatprep.subr.mxu0 0.0
  %141 = vmatpush2.msra.mxu0 0.0
  %142 = vmatprep.subr.mxu0 0.0
  %143 = vmatpush2.msra.mxu0 0.0
  %144 = vmatprep.mubr.f32.mxu0 0.0
  %145 = vmatmul.mubr.f32.gmra.mxu0 %v33
  %v146 = vpop.f32.mrf.mxu0
  %v147 = vadd.f32 0.0, %v146
  %v148 = vpop.f32.mrf.mxu0
  %149 = vmatprep.mubr.f32.mxu0 0.0
  %150 = vmatmul.mubr.f32.gmra.mxu0 %v36
  %v151 = vpop.f32.mrf.mxu0
  %v152 = vadd.f32 0.0, %v151
  %v153 = vpop.f32.mrf.mxu0
  %154 = vmatprep.mubr.f32.mxu0 0.0
  %155 = vmatmul.mubr.f32.gmra.mxu0 %v39
  %v156 = vpop.f32.mrf.mxu0
  %v157 = vadd.f32 0.0, %v156
  %v158 = vpop.f32.mrf.mxu0
  %159 = vmatprep.mubr.f32.mxu0 0.0
  %160 = vmatmul.mubr.f32.gmra.mxu0 %v42
  %v161 = vpop.f32.mrf.mxu0
  %v162 = vadd.f32 0.0, %v161
  %v163 = vpop.f32.mrf.mxu0
  %164 = vmatprep.mubr.f32.mxu0 0.0
  %165 = vmatmul.mubr.f32.gmra.mxu0 %v45
  %v166 = vpop.f32.mrf.mxu0
  %v167 = vadd.f32 0.0, %v166
  %v168 = vpop.f32.mrf.mxu0
  %169 = vmatprep.mubr.f32.mxu0 0.0
  %170 = vmatmul.mubr.f32.gmra.mxu0 %v48
  %v171 = vpop.f32.mrf.mxu0
  %v172 = vadd.f32 0.0, %v171
  %v173 = vpop.f32.mrf.mxu0
  %174 = vmatprep.mubr.f32.mxu0 0.0
  %175 = vmatmul.mubr.f32.gmra.mxu0 %v51
  %v176 = vpop.f32.mrf.mxu0
  %v177 = vadd.f32 0.0, %v176
  %v178 = vpop.f32.mrf.mxu0
  %179 = vmatprep.mubr.f32.mxu0 0.0
  %180 = vmatmul.mubr.f32.gmra.mxu0 %v54
  %v181 = vpop.f32.mrf.mxu0
  %v182 = vadd.f32 0.0, %v181
  %v183 = vpop.f32.mrf.mxu0
  %184 = vmatprep.mubr.f32.mxu0 0.0
  %185 = vmatmul.mubr.f32.gmra.mxu0 %v57
  %v186 = vpop.f32.mrf.mxu0
  %v187 = vadd.f32 0.0, %v186
  %v188 = vpop.f32.mrf.mxu0
  %189 = vmatprep.mubr.f32.mxu0 0.0
  %190 = vmatmul.mubr.f32.gmra.mxu0 %v60
  %v191 = vpop.f32.mrf.mxu0
  %v192 = vadd.f32 0.0, %v191
  %v193 = vpop.f32.mrf.mxu0
  %194 = vmatprep.mubr.f32.mxu0 0.0
  %195 = vmatmul.mubr.f32.gmra.mxu0 %v63
  %v196 = vpop.f32.mrf.mxu0
  %v197 = vadd.f32 0.0, %v196
  %v198 = vpop.f32.mrf.mxu0
  %199 = vmatprep.mubr.f32.mxu0 0.0
  %200 = vmatmul.mubr.f32.gmra.mxu0 %v66
  %v201 = vpop.f32.mrf.mxu0
  %v202 = vadd.f32 0.0, %v201
  %v203 = vpop.f32.mrf.mxu0
  %204 = vmatprep.mubr.f32.mxu0 0.0
  %205 = vmatmul.mubr.f32.gmra.mxu0 %v69
  %v206 = vpop.f32.mrf.mxu0
  %v207 = vadd.f32 0.0, %v206
  %v208 = vpop.f32.mrf.mxu0
  %209 = vmatprep.mubr.f32.mxu0 0.0
  %210 = vmatmul.mubr.f32.gmra.mxu0 %v72
  %v211 = vpop.f32.mrf.mxu0
  %v212 = vadd.f32 0.0, %v211
  %v213 = vpop.f32.mrf.mxu0
  %214 = vmatprep.mubr.f32.mxu0 0.0
  %215 = vmatmul.mubr.f32.gmra.mxu0 %v75
  %v216 = vpop.f32.mrf.mxu0
  %v217 = vadd.f32 0.0, %v216
  %v218 = vpop.f32.mrf.mxu0
  %219 = vmatprep.mubr.f32.mxu0 0.0
  %220 = vmatmul.mubr.f32.gmra.mxu0 %v78
  %v221 = vpop.f32.mrf.mxu0
  %v222 = vadd.f32 0.0, %v221
  %v223 = vpop.f32.mrf.mxu0
  %224 = vdwg.mxu0
  %vm225 = vcmask 785408
  %226 = vst.msk [vmem:[%s2] sm:$0xff] %vm225, %v147
  %227 = vst.msk [vmem:[%s2 + $0x8] sm:$0xff] %vm225, %v152
  %228 = vst.msk [vmem:[%s2 + $0x10] sm:$0xff] %vm225, %v157
  %229 = vst.msk [vmem:[%s2 + $0x18] sm:$0xff] %vm225, %v162
  %230 = vst.msk [vmem:[%s2 + $0x20] sm:$0xff] %vm225, %v167
  %231 = vst.msk [vmem:[%s2 + $0x28] sm:$0xff] %vm225, %v172
  %232 = vst.msk [vmem:[%s2 + $0x30] sm:$0xff] %vm225, %v177
  %233 = vst.msk [vmem:[%s2 + $0x38] sm:$0xff] %vm225, %v182
  %234 = vst.msk [vmem:[%s2 + $0x40] sm:$0xff] %vm225, %v187
  %235 = vst.msk [vmem:[%s2 + $0x48] sm:$0xff] %vm225, %v192
  %236 = vst.msk [vmem:[%s2 + $0x50] sm:$0xff] %vm225, %v197
  %237 = vst.msk [vmem:[%s2 + $0x58] sm:$0xff] %vm225, %v202
  %238 = vst.msk [vmem:[%s2 + $0x60] sm:$0xff] %vm225, %v207
  %239 = vst.msk [vmem:[%s2 + $0x68] sm:$0xff] %vm225, %v212
  %240 = vst.msk [vmem:[%s2 + $0x70] sm:$0xff] %vm225, %v217
  %241 = vst.msk [vmem:[%s2 + $0x78] sm:$0xff] %vm225, %v222
  // Predicated region
  $region10: #{tpu_custom_call.1} parent=0 // pred_check
    _
  $region11: #{tpu_custom_call.1} parent=0 // pred_check_branch
    %243 = sbr.rel (0) target = $region13
  $region12: #{tpu_custom_call.1} parent=0 // pred_region
    _
  $region13: #{tpu_custom_call.1} parent=0 // pred_fallthru
    _
  // Predicated region
  $region14: #{tpu_custom_call.1} parent=0 // pred_check
    _
  $region15: #{tpu_custom_call.1} parent=0 // pred_check_branch
    %245 = sbr.rel (0) target = $region17
  $region16: #{tpu_custom_call.1} parent=0 // pred_region
    _
  $region17: #{tpu_custom_call.1} parent=0 // pred_fallthru
    _

</llo_original>
